<compile_context>
chip_gen: v7x
topology: tpu7x:2x2x1
jax: 0.10.0
libtpu: 0.0.40
codegen_flags: <defaults>
</compile_context>

<pallas_src>
import functools

import jax
import jax.numpy as jnp
from jax.experimental import pallas as pl
from jax.experimental.pallas import tpu as pltpu

EPS = 1e-4
NEG_SLOPE = 0.01


def _round_up(x, m):
    return ((x + m - 1) // m) * m


_VMEM_CAP = None


def _vmem_cap():
    """Physical VMEM capacity (bytes); conservative 64 MiB fallback (v7x per-TC)."""
    global _VMEM_CAP
    if _VMEM_CAP is None:
        cap = None
        try:
            info = pltpu.get_tpu_info()
            cap = getattr(info, "vmem_capacity_bytes", None)
        except Exception:
            cap = None
        _VMEM_CAP = int(cap) if cap else 64 * 1024 * 1024
    return _VMEM_CAP


def _choose_tiles(n, din_p, dout_p, vmem_cap):
    """Pick (td, tk, x_resident, vmem_limit) from static shapes + VMEM capacity."""
    if vmem_cap >= 96 * 1024 * 1024:
        # v5e / v6e: 128 MiB physical VMEM -> big tiles, high scoped limit.
        vmem_limit = 100 * 1024 * 1024
        tile_cap = 1024
        min_j = 1
    else:
        # v7x (64 MiB per-TC) or unknown: cap tiles, leave compiler headroom,
        # and keep >= 2 Dout tiles so the "parallel" axis feeds both TensorCores.
        vmem_limit = 48 * 1024 * 1024
        tile_cap = 512
        min_j = 2

    budget = int(vmem_limit * 0.8)

    # td: largest 128-multiple divisor of dout_p that fits the resident/double-
    # buffered f32 output block and honours the min_j constraint.
    td = 128
    for cand in range(min(tile_cap, dout_p), 127, -128):
        if dout_p % cand:
            continue
        if 2 * n * cand * 4 > budget // 2:
            continue
        if dout_p // cand < min_j and cand > 128 and dout_p > 128:
            continue
        td = cand
        break

    # Can the whole (padded, bf16) x live resident in VMEM?
    rem = budget - 2 * n * td * 4
    x_resident = rem > 0 and 2 * n * din_p * 2 <= rem // 2

    def step_bytes(tk_):
        b = 2 * tk_ * td * 2 + 2 * n * td * 4          # W dbuf + out dbuf
        b += (2 * n * din_p * 2) if x_resident else (2 * n * tk_ * 2)
        return b

    tk = 128
    for cand in range(min(tile_cap, din_p), 127, -128):
        if din_p % cand:
            continue
        if step_bytes(cand) > budget:
            continue
        tk = cand
        break

    # Safety: if even the minimal tiling needs more than the chosen limit, raise it
    # (never beyond physical capacity).
    vmem_limit = max(vmem_limit, min(step_bytes(tk) + (4 << 20), vmem_cap))
    return td, tk, x_resident, int(vmem_limit)


def _linear_bn_lrelu_kernel(x_ref, w_ref, o_ref, *, tk, x_resident):
    # x_ref : [N, Din_p] bf16 (resident)   or [N, TK] bf16 (tiled)
    # w_ref : [TK, TD]   bf16 (pre-transposed weight tile)
    # o_ref : [N, TD]    f32  -- doubles as the K-axis accumulator (index (0, j))
    k = pl.program_id(1)

    @pl.when(k == 0)
    def _init():
        o_ref[...] = jnp.zeros_like(o_ref)

    if x_resident:
        start = pl.multiple_of(k * tk, 128)
        x_blk = x_ref[:, pl.ds(start, tk)]
    else:
        x_blk = x_ref[...]

    # Native MXU contraction (no per-tile transpose), fp32 accumulation.
    o_ref[...] += jnp.dot(x_blk, w_ref[...], preferred_element_type=jnp.float32)

    @pl.when(k == pl.num_programs(1) - 1)
    def _finalize():
        y = o_ref[...]                                     # [N, TD] fp32
        inv_n = 1.0 / y.shape[0]
        mean = jnp.sum(y, axis=0, keepdims=True) * inv_n
        centered = y - mean
        var = jnp.sum(centered * centered, axis=0, keepdims=True) * inv_n  # two-pass, biased
        y_hat = centered * jax.lax.rsqrt(var + EPS)        # BN, affine=False
        o_ref[...] = jnp.maximum(y_hat, NEG_SLOPE * y_hat)  # leaky ReLU


def prepare_weight(weight):
    """One-time weight prep (hoist out of the hot path).

    Casts to bf16, transposes PyTorch [Dout, Din] -> [Din, Dout] (MXU-native
    contraction, no per-tile vxpose) and pads both feature dims to multiples of 128.
    Returns (w_prepped, dout).
    """
    dout, din = weight.shape
    din_p = _round_up(din, 128)
    dout_p = _round_up(dout, 128)
    w_t = weight.T.astype(jnp.bfloat16)
    if (din_p, dout_p) != (din, dout):
        w_t = jnp.pad(w_t, ((0, din_p - din), (0, dout_p - dout)))
    return w_t, dout


@functools.partial(jax.jit, static_argnames=("dout",))
def linear_bn_leaky_relu_prepped(x, w_t, dout):
    """x: [N, Din] float; w_t: [Din_p, Dout_p] bf16 (from prepare_weight)."""
    n, din = x.shape
    din_p, dout_p = w_t.shape
    assert din <= din_p and dout <= dout_p

    td, tk, x_resident, vmem_limit = _choose_tiles(n, din_p, dout_p, _vmem_cap())

    # bf16 MXU input; batch dim is NEVER padded (would corrupt BN statistics).
    x_p = x.astype(jnp.bfloat16)
    if din_p != din:
        x_p = jnp.pad(x_p, ((0, 0), (0, din_p - din)))

    grid = (dout_p // td, din_p // tk)       # (Dout tiles, K/reduction tiles)
    n_j = grid[0]

    if x_resident:
        # Whole x stays in VMEM (constant block index) -> DMA'd once.
        x_spec = pl.BlockSpec((n, din_p), lambda j, k: (0, 0))
    else:
        x_spec = pl.BlockSpec((n, tk), lambda j, k: (0, k))

    kernel = functools.partial(_linear_bn_lrelu_kernel, tk=tk, x_resident=x_resident)

    x_reads = 1 if x_resident else n_j
    out = pl.pallas_call(
        kernel,
        out_shape=jax.ShapeDtypeStruct((n, dout_p), jnp.float32),
        grid_spec=pltpu.PrefetchScalarGridSpec(
            num_scalar_prefetch=0,
            grid=grid,
            in_specs=[
                x_spec,
                pl.BlockSpec((tk, td), lambda j, k: (k, j)),   # W^T tiles [Din, Dout]
            ],
            out_specs=pl.BlockSpec((n, td), lambda j, k: (0, j)),
        ),
        compiler_params=pltpu.CompilerParams(
            # Dout tiles are independent -> shard across v7x's 2 TensorCores;
            # K is a reduction into the resident output block -> arbitrary.
            dimension_semantics=("parallel", "arbitrary"),
            vmem_limit_bytes=vmem_limit,
        ),
        cost_estimate=pl.CostEstimate(
            flops=2 * n * din_p * dout_p,
            transcendentals=0,
            bytes_accessed=x_reads * n * din_p * 2 + din_p * dout_p * 2 + n * dout_p * 4,
        ),
    )(x_p, w_t)

    if dout_p != dout:
        out = out[:, :dout]   # drop padded (all-zero) feature columns
    return out


def linear_bn_leaky_relu(x, weight):
    """Convenience wrapper: weight in PyTorch [Dout, Din] layout, fp32."""
    w_t, dout = prepare_weight(weight)
    return linear_bn_leaky_relu_prepped(x, w_t, dout)


def reference(x, weight):
    """Pure-JAX fp32 reference: Linear(no bias) + training-mode BN + LeakyReLU."""
    y = x @ weight.T
    mean = jnp.mean(y, axis=0, keepdims=True)
    var = jnp.mean((y - mean) ** 2, axis=0, keepdims=True)
    y_hat = (y - mean) / jnp.sqrt(var + EPS)
    return jnp.where(y_hat >= 0, y_hat, NEG_SLOPE * y_hat)


if __name__ == "__main__":
    key = jax.random.PRNGKey(0)
    k_x, k_w = jax.random.split(key)

    batch, in_features, out_features = 8, 32, 64

    x = jax.random.normal(k_x, (batch, in_features), dtype=jnp.float32)
    # Deterministic "kaiming-uniform-like" init for nn.Linear weight [Dout, Din].
    bound = 1.0 / (in_features ** 0.5)
    weight = jax.random.uniform(
        k_w, (out_features, in_features), minval=-bound, maxval=bound,
        dtype=jnp.float32)

    # One-time weight prep (hoisted out of the per-call path), then run the kernel.
    w_prepped, dout = prepare_weight(weight)
    out = linear_bn_leaky_relu_prepped(x, w_prepped, dout)
    out = jax.block_until_ready(out)
    assert out.shape == (batch, out_features)

    # Validate against the reference evaluated on the same bf16-quantized operands
    # (the kernel feeds the MXU bf16 with fp32 accumulation / fp32 BN math).
    # TODO(synk): BatchNorm1d running-stats update (a training side effect, not part
    # of the forward output) is not emitted by the kernel.
    x_q = x.astype(jnp.bfloat16).astype(jnp.float32)
    w_q = weight.astype(jnp.bfloat16).astype(jnp.float32)
    ref = reference(x_q, w_q)
    assert jnp.allclose(out, ref, atol=2e-3, rtol=2e-3), "mismatch vs reference"

    print("KERNEL_OK")
</pallas_src>

<mosaic_0001>
module attributes {stable_mosaic.version = 11 : i64} {
  func.func @_linear_bn_lrelu_kernel(%arg0: i32, %arg1: i32, %arg2: memref<8x128xbf16, #tpu.memory_space<vmem>>, %arg3: memref<128x128xbf16, #tpu.memory_space<vmem>>, %arg4: memref<8x128xf32, #tpu.memory_space<vmem>>) attributes {dimension_semantics = [#tpu.dimension_semantics<parallel>, #tpu.dimension_semantics<arbitrary>], iteration_bounds = array<i64: 1, 1>, scalar_prefetch = 0 : i64, scratch_operands = 0 : i64, tpu.core_type = #tpu.core_type<tc>, window_params = [{pipeline_mode = #tpu.pipeline_mode<synchronous>, transform_indices = @transform_0, window_bounds = array<i64: 8, 128>}, {transform_indices = @transform_1, window_bounds = array<i64: 128, 128>}, {transform_indices = @transform_2, window_bounds = array<i64: 8, 128>}]} {
    %c0_i32 = arith.constant 0 : i32
    %0 = arith.cmpi eq, %arg1, %c0_i32 : i32
    %1 = arith.extui %0 : i1 to i32
    %c0_i32_0 = arith.constant 0 : i32
    %2 = arith.cmpi ne, %1, %c0_i32_0 : i32
    scf.if %2 {
      %cst_9 = arith.constant 0.000000e+00 : f32
      %15 = vector.broadcast %cst_9 : f32 to vector<8x128xf32>
      %c0_10 = arith.constant 0 : index
      %c0_11 = arith.constant 0 : index
      %16 = vector.load %arg4[%c0_10, %c0_11] : memref<8x128xf32, #tpu.memory_space<vmem>>, vector<8x128xf32>
      tpu.vector_store %arg4[%c0_10, %c0_11], %15 {strides = array<i32>} : memref<8x128xf32, #tpu.memory_space<vmem>>, vector<8x128xf32>,
    } else {
    }
    %c128_i32 = arith.constant 128 : i32
    %3 = arith.muli %arg1, %c128_i32 : i32
    %4 = tpu.assume_multiple %3, 128 : i32
    %c0 = arith.constant 0 : index
    %5 = arith.index_cast %4 : i32 to index
    %6 = vector.load %arg2[%c0, %5] : memref<8x128xbf16, #tpu.memory_space<vmem>>, vector<8x128xbf16>
    %c0_1 = arith.constant 0 : index
    %c0_2 = arith.constant 0 : index
    %7 = vector.load %arg4[%c0_1, %c0_2] : memref<8x128xf32, #tpu.memory_space<vmem>>, vector<8x128xf32>
    %c0_3 = arith.constant 0 : index
    %c0_4 = arith.constant 0 : index
    %8 = vector.load %arg3[%c0_3, %c0_4] : memref<128x128xbf16, #tpu.memory_space<vmem>>, vector<128x128xbf16>
    %cst = arith.constant dense<0.000000e+00> : vector<8x128xf32>
    %9 = tpu.matmul %6, %8, %cst {dimension_numbers = #tpu.dot_dimension_numbers<[1], [0], [0], [1], [0, 0, 1, 1], [], []>} : vector<8x128xbf16>, vector<128x128xbf16>, vector<8x128xf32> -> vector<8x128xf32>
    %10 = arith.addf %7, %9 : vector<8x128xf32>
    %c0_5 = arith.constant 0 : index
    %c0_6 = arith.constant 0 : index
    %11 = vector.load %arg4[%c0_5, %c0_6] : memref<8x128xf32, #tpu.memory_space<vmem>>, vector<8x128xf32>
    tpu.vector_store %arg4[%c0_5, %c0_6], %10 {strides = array<i32>} : memref<8x128xf32, #tpu.memory_space<vmem>>, vector<8x128xf32>,
    %c0_i32_7 = arith.constant 0 : i32
    %12 = arith.cmpi eq, %arg1, %c0_i32_7 : i32
    %13 = arith.extui %12 : i1 to i32
    %c0_i32_8 = arith.constant 0 : i32
    %14 = arith.cmpi ne, %13, %c0_i32_8 : i32
    scf.if %14 {
      %c0_9 = arith.constant 0 : index
      %c0_10 = arith.constant 0 : index
      %15 = vector.load %arg4[%c0_9, %c0_10] : memref<8x128xf32, #tpu.memory_space<vmem>>, vector<8x128xf32>
      %cst_11 = arith.constant dense<0.000000e+00> : vector<128xf32>
      %16 = vector.multi_reduction <add>, %15, %cst_11 [0] : vector<8x128xf32> to vector<128xf32>
      %17 = vector.shape_cast %16 : vector<128xf32> to vector<1x128xf32>
      %cst_12 = arith.constant 1.250000e-01 : f32
      %18 = vector.broadcast %cst_12 : f32 to vector<1x128xf32>
      %19 = arith.mulf %17, %18 : vector<1x128xf32>
      %20 = vector.broadcast %19 : vector<1x128xf32> to vector<8x128xf32>
      %21 = arith.subf %15, %20 : vector<8x128xf32>
      %22 = arith.mulf %21, %21 : vector<8x128xf32>
      %cst_13 = arith.constant dense<0.000000e+00> : vector<128xf32>
      %23 = vector.multi_reduction <add>, %22, %cst_13 [0] : vector<8x128xf32> to vector<128xf32>
      %24 = vector.shape_cast %23 : vector<128xf32> to vector<1x128xf32>
      %cst_14 = arith.constant 1.250000e-01 : f32
      %25 = vector.broadcast %cst_14 : f32 to vector<1x128xf32>
      %26 = arith.mulf %24, %25 : vector<1x128xf32>
      %cst_15 = arith.constant 9.99999974E-5 : f32
      %27 = vector.broadcast %cst_15 : f32 to vector<1x128xf32>
      %28 = arith.addf %26, %27 : vector<1x128xf32>
      %29 = math.rsqrt %28 : vector<1x128xf32>
      %30 = vector.broadcast %29 : vector<1x128xf32> to vector<8x128xf32>
      %31 = arith.mulf %21, %30 : vector<8x128xf32>
      %cst_16 = arith.constant 0.00999999977 : f32
      %32 = vector.broadcast %cst_16 : f32 to vector<8x128xf32>
      %33 = arith.mulf %32, %31 : vector<8x128xf32>
      %34 = arith.maximumf %31, %33 : vector<8x128xf32>
      %c0_17 = arith.constant 0 : index
      %c0_18 = arith.constant 0 : index
      %35 = vector.load %arg4[%c0_17, %c0_18] : memref<8x128xf32, #tpu.memory_space<vmem>>, vector<8x128xf32>
      tpu.vector_store %arg4[%c0_17, %c0_18], %34 {strides = array<i32>} : memref<8x128xf32, #tpu.memory_space<vmem>>, vector<8x128xf32>,
    } else {
    }
    return
  }
  func.func @transform_0(%arg0: i32, %arg1: i32) -> (i32, i32) {
    %c0_i32 = arith.constant 0 : i32
    %c0_i32_0 = arith.constant 0 : i32
    %c0_i32_1 = arith.constant 0 : i32
    return %c0_i32, %c0_i32_0 : i32, i32
  }
  func.func @transform_1(%arg0: i32, %arg1: i32) -> (i32, i32) {
    %c0_i32 = arith.constant 0 : i32
    return %arg1, %arg0 : i32, i32
  }
  func.func @transform_2(%arg0: i32, %arg1: i32) -> (i32, i32) {
    %c0_i32 = arith.constant 0 : i32
    %c0_i32_0 = arith.constant 0 : i32
    return %c0_i32, %arg0 : i32, i32
  }
}

</mosaic_0001>

<llo_original>
// kernel: linear_bn_leaky_relu_prepped.1
$region0: #{linear_bn_leaky_relu_prepped.1}
  #allocation0 [shape = 'u32[]', space=smem, size = 0x4, offset = 0x4, fixed_abs, tag = 'smem constant byte address 0x4 - core index']
  #allocation1 [shape = 'u32[144,128]{1,0:T(1,128)}', space=vmem, size = 0x12000, scoped, tag = 'internal scratch']
  %s0 = inlined_call_operand.vmem [shape: bf16[8,128], index: 0, kind: input, shape index: {}]
  %s1 = inlined_call_operand.hbm [shape: bf16[128,128], index: 1, kind: input, shape index: {}]
  %s2 = inlined_call_operand.hbm [shape: f32[8,128], index: 2, kind: output, shape index: {}]
  %s3 = sld [smem:[#allocation0]]
  $region30: #{linear_bn_leaky_relu_prepped.1} parent=0
    _
  %s5 = ssub.s32 1, %s3
  %s6 = scalar_select 0, %s5, %s3
  $region1: #{linear_bn_leaky_relu_prepped.1} parent=0
    #allocation2 [shape = 'u8[32768]{0}', space=vmem, size = 0x8000, scoped, tag = 'input window, operand 1, single buffered']
    #allocation3 [shape = 's32[1]{0}', space=sflag, size = 0x4, scoped, tag = 'scoped memory for linear_bn_leaky_relu_prepped.1']
    #allocation4 [shape = 's32[1]{0}', space=sflag, size = 0x4, scoped, tag = 'scoped memory for linear_bn_leaky_relu_prepped.1']
    #allocation5 [shape = 'u8[4096]{0}', space=vmem, size = 0x1000, scoped, tag = 'output window, operand 0, single buffered']
    %7 = vsyncpa [#allocation3], 0
    %8 = vsyncpa [#allocation4], 0
    // Predicated region
    $region2: #{linear_bn_leaky_relu_prepped.1} parent=1 // pred_check
      _
    $region3: #{linear_bn_leaky_relu_prepped.1} parent=1 // pred_check_branch
      %10 = sbr.rel (0) target = $region5
    $region4: #{linear_bn_leaky_relu_prepped.1} parent=1 // pred_region
      _
    $region5: #{linear_bn_leaky_relu_prepped.1} parent=1 // pred_fallthru
      _
    // Predicated region
    $region6: #{linear_bn_leaky_relu_prepped.1} parent=1 // pred_check
      _
    $region7: #{linear_bn_leaky_relu_prepped.1} parent=1 // pred_check_branch
      %12 = sbr.rel (0) target = $region9
    $region8: #{linear_bn_leaky_relu_prepped.1} parent=1 // pred_region
      %s14 = ssub.s32 1024, 1024
      %15 = vsyncadd [#allocation3], %s14
      %s16 = sshll.u32 [#allocation2], 4
      %s17 = int_to_ptr.vmem [resolvable:$true] %s16
      %22 = dma.hbm_to_vmem [thread:$0]  %s1, 1024, %s17, [#allocation3], 64, 64, 4
    $region9: #{linear_bn_leaky_relu_prepped.1} parent=1 // pred_fallthru
      _
    // Predicated region
    $region10: #{linear_bn_leaky_relu_prepped.1} parent=1 // pred_check
      _
    $region11: #{linear_bn_leaky_relu_prepped.1} parent=1 // pred_check_branch
      %24 = sbr.rel (0) target = $region13
    $region12: #{linear_bn_leaky_relu_prepped.1} parent=1 // pred_region
      %25 = dma.done [#allocation3], 1024
    $region13: #{linear_bn_leaky_relu_prepped.1} parent=1 // pred_fallthru
      _
    %p27 = scmp.eq.s32.totalorder 0, 0
    // Predicated region
    $region14: #{linear_bn_leaky_relu_prepped.1} parent=1 // pred_check
      %p28 = pneg %p27
    $region15: #{linear_bn_leaky_relu_prepped.1} parent=1 // pred_check_branch
      %30 = sbr.rel (%p28) target = $region17
    $region16: #{linear_bn_leaky_relu_prepped.1} parent=1 // pred_region
      %31 = vst [vmem:[#allocation5] sm:$0xff] 0.0
    $region17: #{linear_bn_leaky_relu_prepped.1} parent=1 // pred_fallthru
      _
    %s32 = smul.u32 0, 128
    %s33 = sshra.s32 %s32, 7
    %s34 = sand.u32 %s32, 127
    %s35 = smul.addr %s33, 4
    %s36 = scalar_lea.vmem %s0, %s35
    %v37 = vld [vmem:[%s36] sm:$0xf]
    %v38 = vld [vmem:[#allocation5] sm:$0xff]
    %v39 = vld [vmem:[#allocation2] sm:$0xf]
    %v40 = vld [vmem:[#allocation2 + $0x4] sm:$0xf]
    %v41 = vld [vmem:[#allocation2 + $0x8] sm:$0xf]
    %v42 = vld [vmem:[#allocation2 + $0xc] sm:$0xf]
    %v43 = vld [vmem:[#allocation2 + $0x10] sm:$0xf]
    %v44 = vld [vmem:[#allocation2 + $0x14] sm:$0xf]
    %v45 = vld [vmem:[#allocation2 + $0x18] sm:$0xf]
    %v46 = vld [vmem:[#allocation2 + $0x1c] sm:$0xf]
    %v47 = vld [vmem:[#allocation2 + $0x20] sm:$0xf]
    %v48 = vld [vmem:[#allocation2 + $0x24] sm:$0xf]
    %v49 = vld [vmem:[#allocation2 + $0x28] sm:$0xf]
    %v50 = vld [vmem:[#allocation2 + $0x2c] sm:$0xf]
    %v51 = vld [vmem:[#allocation2 + $0x30] sm:$0xf]
    %v52 = vld [vmem:[#allocation2 + $0x34] sm:$0xf]
    %v53 = vld [vmem:[#allocation2 + $0x38] sm:$0xf]
    %v54 = vld [vmem:[#allocation2 + $0x3c] sm:$0xf]
    %v71 = vunpack.c.l.b16 %v39
    %v72 = vunpack.c.l.b16 %v40
    %v73 = vunpack.c.l.b16 %v41
    %v74 = vunpack.c.l.b16 %v42
    %v75 = vunpack.c.l.b16 %v43
    %v76 = vunpack.c.l.b16 %v44
    %v77 = vunpack.c.l.b16 %v45
    %v78 = vunpack.c.l.b16 %v46
    %v79 = vunpack.c.l.b16 %v47
    %v80 = vunpack.c.l.b16 %v48
    %v81 = vunpack.c.l.b16 %v49
    %v82 = vunpack.c.l.b16 %v50
    %v83 = vunpack.c.l.b16 %v51
    %v84 = vunpack.c.l.b16 %v52
    %v85 = vunpack.c.l.b16 %v53
    %v86 = vunpack.c.l.b16 %v54
    %v87 = vpack.c.b16 %v72, %v71
    %v88 = vpack.c.b16 %v74, %v73
    %v89 = vpack.c.b16 %v76, %v75
    %v90 = vpack.c.b16 %v78, %v77
    %v91 = vpack.c.b16 %v80, %v79
    %v92 = vpack.c.b16 %v82, %v81
    %v93 = vpack.c.b16 %v84, %v83
    %v94 = vpack.c.b16 %v86, %v85
    %103 = vmatprep.subr.bf16.mxu0 0
    %104 = vmatpush1.bf16.msra.mxu0 %v87
    %105 = vmatprep.subr.bf16.mxu0 0
    %106 = vmatpush1.bf16.msra.mxu0 %v88
    %107 = vmatprep.subr.bf16.mxu0 0
    %108 = vmatpush1.bf16.msra.mxu0 %v89
    %109 = vmatprep.subr.bf16.mxu0 0
    %110 = vmatpush1.bf16.msra.mxu0 %v90
    %111 = vmatprep.subr.bf16.mxu0 0
    %112 = vmatpush1.bf16.msra.mxu0 %v91
    %113 = vmatprep.subr.bf16.mxu0 0
    %114 = vmatpush1.bf16.msra.mxu0 %v92
    %115 = vmatprep.subr.bf16.mxu0 0
    %116 = vmatpush1.bf16.msra.mxu0 %v93
    %117 = vmatprep.subr.bf16.mxu0 0
    %118 = vmatpush1.bf16.msra.mxu0 %v94
    %119 = vmatprep.subr.bf16.mxu0 0
    %120 = vmatpush1.bf16.msra.mxu0 0
    %121 = vmatprep.subr.bf16.mxu0 0
    %122 = vmatpush1.bf16.msra.mxu0 0
    %123 = vmatprep.subr.bf16.mxu0 0
    %124 = vmatpush1.bf16.msra.mxu0 0
    %125 = vmatprep.subr.bf16.mxu0 0
    %126 = vmatpush1.bf16.msra.mxu0 0
    %127 = vmatprep.subr.bf16.mxu0 0
    %128 = vmatpush1.bf16.msra.mxu0 0
    %129 = vmatprep.subr.bf16.mxu0 0
    %130 = vmatpush1.bf16.msra.mxu0 0
    %131 = vmatprep.subr.bf16.mxu0 0
    %132 = vmatpush1.bf16.msra.mxu0 0
    %133 = vmatprep.subr.bf16.mxu0 0
    %134 = vmatpush1.bf16.msra.mxu0 0
    %135 = vmatprep.mubr.bf16.mxu0 0
    %136 = vmatmul.mubr.bf16.gmra.mrb[0].mxu0 %v37
    %v137 = vpop.f32.mrb[0].mxu0
    %v138 = vadd.f32 0.0, %v137
    %v139 = vpop.f32.mrb[0].mxu0
    %v140 = vpop.f32.mrb[0].mxu0
    %v141 = vpop.f32.mrb[0].mxu0
    %142 = vdwg.mxu0
    %v143 = vadd.f32 %v38, %v138
    %144 = vst [vmem:[#allocation5] sm:$0xff] %v143
    // Predicated region
    $region18: #{linear_bn_leaky_relu_prepped.1} parent=1 // pred_check
      %p145 = pneg %p27
    $region19: #{linear_bn_leaky_relu_prepped.1} parent=1 // pred_check_branch
      %147 = sbr.rel (%p145) target = $region21
    $region20: #{linear_bn_leaky_relu_prepped.1} parent=1 // pred_region
      %v148 = vld [vmem:[#allocation5] sm:$0xff]
      %v149 = vrot.slane %v148, 4
      %v150 = vadd.f32 %v148, %v149
      %v151 = vrot.slane %v150, 2
      %v152 = vadd.f32 %v150, %v151
      %v153 = vrot.slane %v152, 1
      %v154 = vadd.f32 %v152, %v153
      %v155 = vmul.f32 %v154, 0.125
      %v156 = vsub.f32 %v148, %v155
      %v157 = vmul.f32 %v156, %v156
      %v158 = vrot.slane %v157, 4
      %v159 = vadd.f32 %v157, %v158
      %v160 = vrot.slane %v159, 2
      %v161 = vadd.f32 %v159, %v160
      %v162 = vrot.slane %v161, 1
      %v163 = vadd.f32 %v161, %v162
      %v164 = vmul.f32 %v163, 0.125
      %v165 = vadd.f32 %v164, 0.0001
      %v166 = vrsqrt.pop %v165
      %v167 = vmul.f32 %v156, %v166
      %v168 = vmul.f32 %v167, 0.01
      %v169 = vmax.f32 %v167, %v168
      %170 = vst [vmem:[#allocation5] sm:$0xff] %v169
    $region21: #{linear_bn_leaky_relu_prepped.1} parent=1 // pred_fallthru
      _
    // Predicated region
    $region22: #{linear_bn_leaky_relu_prepped.1} parent=1 // pred_check
      _
    $region23: #{linear_bn_leaky_relu_prepped.1} parent=1 // pred_check_branch
      %172 = sbr.rel (0) target = $region25
    $region24: #{linear_bn_leaky_relu_prepped.1} parent=1 // pred_region
      %s174 = ssub.s32 128, 128
      %175 = vsyncadd [#allocation4], %s174
      %s177 = sshll.u32 [#allocation5], 4
      %s178 = int_to_ptr.vmem [resolvable:$true] %s177
      %180 = dma.vmem_to_hbm [thread:$0]  %s178, 128, %s2, [#allocation4]
    $region25: #{linear_bn_leaky_relu_prepped.1} parent=1 // pred_fallthru
      _
    // Predicated region
    $region26: #{linear_bn_leaky_relu_prepped.1} parent=1 // pred_check
      _
    $region27: #{linear_bn_leaky_relu_prepped.1} parent=1 // pred_check_branch
      %182 = sbr.rel (0) target = $region29
    $region28: #{linear_bn_leaky_relu_prepped.1} parent=1 // pred_region
      %183 = dma.done [#allocation4], 128
    $region29: #{linear_bn_leaky_relu_prepped.1} parent=1 // pred_fallthru
      _
    %184 = vsyncpa [#allocation3], 1
    %185 = vsyncpa [#allocation4], 1

</llo_original>
